<compile_context>
chip_gen: v6e
topology: v6e:2x2x1
jax: 0.10.0
libtpu: 0.0.40
codegen_flags: <defaults>
</compile_context>

<pallas_src>
import functools

import jax
import jax.numpy as jnp
from jax import lax
from jax.experimental import pallas as pl
from jax.experimental.pallas import tpu as pltpu


_BN_EPS = 1e-5
_LANE = 128


def _round_up(x, m):
    return (x + m - 1) // m * m


# ---------------------------------------------------------------------------
# Pallas kernel: tiled im2col-GEMM (bf16 MXU, f32 accum) + scale/shift + LReLU
# ---------------------------------------------------------------------------
def _conv_gemm_kernel(patches_ref, w_ref, scale_ref, shift_ref, o_ref, acc_ref,
                      *, apply_lrelu):
    k = pl.program_id(1)

    @pl.when(k == 0)
    def _():
        acc_ref[...] = jnp.zeros_like(acc_ref)

    acc_ref[...] += jnp.dot(patches_ref[...], w_ref[...],
                            preferred_element_type=jnp.float32)

    @pl.when(k == pl.num_programs(1) - 1)
    def _():
        y = acc_ref[...] * scale_ref[...] + shift_ref[...]
        if apply_lrelu:
            y = jnp.where(y >= 0.0, y, 0.2 * y)   # LeakyReLU(negative_slope=0.2)
        o_ref[...] = y.astype(o_ref.dtype)


def conv2d_fused(x, w_hwio, scale, shift, *, stride, padding, apply_lrelu):
    """x: (N, H, W, Cin) f32; w_hwio: (kh, kw, Cin, Cout); scale/shift: (Cout,)."""
    N, H, W, Cin = x.shape
    kh, kw, _, Cout = w_hwio.shape
    Ho = (H + 2 * padding - kh) // stride + 1
    Wo = (W + 2 * padding - kw) // stride + 1
    M = N * Ho * Wo
    K = kh * kw * Cin

    # --- glue: im2col in bf16 (MXU input dtype; halves patches HBM traffic) ---
    # TODO(synk): form patches on the fly in VMEM (per-tap dots over an input
    # slab) to remove the kh*kw HBM inflation entirely; kept as JAX glue here.
    xb = x.astype(jnp.bfloat16)
    xp = jnp.pad(xb, ((0, 0), (padding, padding), (padding, padding), (0, 0)))
    slices = []
    for i in range(kh):
        for j in range(kw):
            slices.append(xp[:, i:i + stride * Ho:stride, j:j + stride * Wo:stride, :])
    patches = jnp.stack(slices, axis=3).reshape(M, K)
    w_mat = w_hwio.reshape(K, Cout).astype(jnp.bfloat16)

    # --- tile sizes: MXU-aligned, VMEM-bounded even on v7x (64 MiB physical) ---
    tm = min(256, _round_up(M, 8))
    tk = min(2048, _round_up(K, _LANE))
    M_pad = _round_up(M, tm)
    K_pad = _round_up(K, tk)
    Cout_pad = _round_up(Cout, _LANE)            # lane-dense output stores

    patches = jnp.pad(patches, ((0, M_pad - M), (0, K_pad - K)))
    w_mat = jnp.pad(w_mat, ((0, K_pad - K), (0, Cout_pad - Cout)))
    scale_p = jnp.pad(scale.reshape(1, Cout).astype(jnp.float32),
                      ((0, 0), (0, Cout_pad - Cout)))
    shift_p = jnp.pad(shift.reshape(1, Cout).astype(jnp.float32),
                      ((0, 0), (0, Cout_pad - Cout)))

    nm, nk = M_pad // tm, K_pad // tk

    kernel = functools.partial(_conv_gemm_kernel, apply_lrelu=apply_lrelu)
    cost = pl.CostEstimate(
        flops=2 * M_pad * K_pad * Cout_pad,
        transcendentals=0,
        bytes_accessed=(M_pad * K_pad * 2            # bf16 patches
                        + nm * K_pad * Cout_pad * 2  # bf16 weights (re-read per M tile)
                        + M_pad * Cout_pad * 4))     # f32 output

    out = pl.pallas_call(
        kernel,
        out_shape=jax.ShapeDtypeStruct((M_pad, Cout_pad), jnp.float32),
        grid_spec=pltpu.PrefetchScalarGridSpec(
            num_scalar_prefetch=0,
            grid=(nm, nk),
            in_specs=[
                pl.BlockSpec((tm, tk), lambda i, k: (i, k)),        # patches tile
                pl.BlockSpec((tk, Cout_pad), lambda i, k: (k, 0)),  # weight tile
                pl.BlockSpec((1, Cout_pad), lambda i, k: (0, 0)),   # resident scale
                pl.BlockSpec((1, Cout_pad), lambda i, k: (0, 0)),   # resident shift
            ],
            out_specs=pl.BlockSpec((tm, Cout_pad), lambda i, k: (i, 0)),
            scratch_shapes=[pltpu.VMEM((tm, Cout_pad), jnp.float32)],
        ),
        compiler_params=pltpu.CompilerParams(
            dimension_semantics=("parallel", "arbitrary"),
            vmem_limit_bytes=32 * 1024 * 1024),
        cost_estimate=cost,
    )(patches, w_mat, scale_p, shift_p)

    return out[:M, :Cout].reshape(N, Ho, Wo, Cout)


# ---------------------------------------------------------------------------
# Parameter construction (deterministic, mirrors Discriminator.__init__ shapes)
# ---------------------------------------------------------------------------
def init_discriminator_params(key, config):
    blocks = config['blocks']
    in_ch = config['in_channels']
    f0 = blocks[0]['filters']

    def nrm(k, shape, s=0.05):
        return s * jax.random.normal(k, shape, jnp.float32)

    params = []
    k = key

    # Conv2d(in_channels, f0, k=4, s=2, p=1, bias=True) + LeakyReLU(0.2)
    k, k1, k2 = jax.random.split(k, 3)
    params.append(dict(kind='conv_bias', w=nrm(k1, (4, 4, in_ch, f0)),
                       b=nrm(k2, (f0,)), stride=2, lrelu=True))
    prev = f0

    # Middle blocks: Conv2d(s=2, bias=False) + BatchNorm2d + LeakyReLU(0.2)
    for i in range(1, len(blocks) - 1):
        cur = min(blocks[i]['filters'], f0 * 8)
        k, kw_, kg, kb, km, kv = jax.random.split(k, 6)
        params.append(dict(kind='conv_bn', w=nrm(kw_, (4, 4, prev, cur)),
                           gamma=1.0 + nrm(kg, (cur,)), beta=nrm(kb, (cur,)),
                           mean=nrm(km, (cur,)), var=1.0 + jnp.abs(nrm(kv, (cur,))),
                           stride=2, lrelu=True))
        prev = cur

    # Last block: Conv2d(s=1, bias=False) + BatchNorm2d + LeakyReLU(0.2)
    cur = min(blocks[-1]['filters'], f0 * 8)
    k, kw_, kg, kb, km, kv = jax.random.split(k, 6)
    params.append(dict(kind='conv_bn', w=nrm(kw_, (4, 4, prev, cur)),
                       gamma=1.0 + nrm(kg, (cur,)), beta=nrm(kb, (cur,)),
                       mean=nrm(km, (cur,)), var=1.0 + jnp.abs(nrm(kv, (cur,))),
                       stride=1, lrelu=True))
    prev = cur

    # Final Conv2d(prev, 1, k=4, s=1, p=1, bias=True), no activation
    k, k1, k2 = jax.random.split(k, 3)
    params.append(dict(kind='conv_bias', w=nrm(k1, (4, 4, prev, 1)),
                       b=nrm(k2, (1,)), stride=1, lrelu=False))
    return params


def _layer_scale_shift(p):
    if p['kind'] == 'conv_bias':
        return jnp.ones_like(p['b']), p['b']
    # BatchNorm2d folded into per-channel affine (eval-mode / running stats).
    # TODO(synk): training-mode BatchNorm (batch stats + running-stat update) not implemented.
    scale = p['gamma'] / jnp.sqrt(p['var'] + _BN_EPS)
    shift = p['beta'] - p['mean'] * scale
    return scale, shift


def discriminator_forward(params, x_nchw):
    """x_nchw: (N, C, H, W) like the PyTorch module; returns (N, 1, Ho, Wo)."""
    x = jnp.transpose(x_nchw, (0, 2, 3, 1))  # NCHW -> NHWC
    for p in params:
        scale, shift = _layer_scale_shift(p)
        x = conv2d_fused(x, p['w'], scale, shift,
                         stride=p['stride'], padding=1, apply_lrelu=p['lrelu'])
    return jnp.transpose(x, (0, 3, 1, 2))    # NHWC -> NCHW


# ---------------------------------------------------------------------------
# Pure-JAX f32 reference (same math via lax.conv), used as a correctness check
# ---------------------------------------------------------------------------
def reference_forward(params, x_nchw):
    x = jnp.transpose(x_nchw, (0, 2, 3, 1))
    for p in params:
        y = lax.conv_general_dilated(
            x, p['w'], window_strides=(p['stride'], p['stride']),
            padding=[(1, 1), (1, 1)],
            dimension_numbers=('NHWC', 'HWIO', 'NHWC'))
        scale, shift = _layer_scale_shift(p)
        y = y * scale + shift
        if p['lrelu']:
            y = jnp.where(y >= 0.0, y, 0.2 * y)
        x = y
    return jnp.transpose(x, (0, 3, 1, 2))


if __name__ == "__main__":
    # Small synthetic discriminator config (3 blocks -> 4 conv layers total).
    config = {'in_channels': 4,
              'blocks': [{'filters': 8}, {'filters': 16}, {'filters': 32}]}

    key = jax.random.PRNGKey(0)
    kp, kx = jax.random.split(key)
    params = init_discriminator_params(kp, config)

    x = jax.random.normal(kx, (2, 4, 16, 16), jnp.float32)  # NCHW, like PyTorch

    out = jax.block_until_ready(discriminator_forward(params, x))
    ref = jax.block_until_ready(reference_forward(params, x))

    assert out.shape == (2, 1, 2, 2), out.shape
    # bf16 MXU inputs (f32 accumulation) vs. f32 reference -> looser tolerance.
    if not jnp.allclose(out, ref, atol=3e-2, rtol=3e-2):
        raise AssertionError("Pallas output mismatch vs JAX reference")
    print("KERNEL_OK")
</pallas_src>

<mosaic_0001>
module attributes {stable_mosaic.version = 11 : i64} {
  func.func @_conv_gemm_kernel(%arg0: i32, %arg1: i32, %arg2: memref<128x128xbf16, #tpu.memory_space<vmem>>, %arg3: memref<128x128xbf16, #tpu.memory_space<vmem>>, %arg4: memref<1x128xf32, #tpu.memory_space<vmem>>, %arg5: memref<1x128xf32, #tpu.memory_space<vmem>>, %arg6: memref<128x128xf32, #tpu.memory_space<vmem>>, %arg7: memref<128x128xf32, #tpu.memory_space<vmem>>) attributes {dimension_semantics = [#tpu.dimension_semantics<parallel>, #tpu.dimension_semantics<arbitrary>], iteration_bounds = array<i64: 1, 1>, scalar_prefetch = 0 : i64, scratch_operands = 1 : i64, tpu.core_type = #tpu.core_type<tc>, window_params = [{transform_indices = @transform_0, window_bounds = array<i64: 128, 128>}, {transform_indices = @transform_1, window_bounds = array<i64: 128, 128>}, {pipeline_mode = #tpu.pipeline_mode<synchronous>, transform_indices = @transform_2, window_bounds = array<i64: 1, 128>}, {pipeline_mode = #tpu.pipeline_mode<synchronous>, transform_indices = @transform_3, window_bounds = array<i64: 1, 128>}, {transform_indices = @transform_4, window_bounds = array<i64: 128, 128>}]} {
    %c0_i32 = arith.constant 0 : i32
    %0 = arith.cmpi eq, %arg1, %c0_i32 : i32
    %1 = arith.extui %0 : i1 to i32
    %c0_i32_0 = arith.constant 0 : i32
    %2 = arith.cmpi ne, %1, %c0_i32_0 : i32
    scf.if %2 {
      %cst_10 = arith.constant 0.000000e+00 : f32
      %12 = vector.broadcast %cst_10 : f32 to vector<128x128xf32>
      %c0_11 = arith.constant 0 : index
      %c0_12 = arith.constant 0 : index
      %13 = vector.load %arg7[%c0_11, %c0_12] : memref<128x128xf32, #tpu.memory_space<vmem>>, vector<128x128xf32>
      tpu.vector_store %arg7[%c0_11, %c0_12], %12 {strides = array<i32>} : memref<128x128xf32, #tpu.memory_space<vmem>>, vector<128x128xf32>,
    } else {
    }
    %c0 = arith.constant 0 : index
    %c0_1 = arith.constant 0 : index
    %3 = vector.load %arg7[%c0, %c0_1] : memref<128x128xf32, #tpu.memory_space<vmem>>, vector<128x128xf32>
    %c0_2 = arith.constant 0 : index
    %c0_3 = arith.constant 0 : index
    %4 = vector.load %arg2[%c0_2, %c0_3] : memref<128x128xbf16, #tpu.memory_space<vmem>>, vector<128x128xbf16>
    %c0_4 = arith.constant 0 : index
    %c0_5 = arith.constant 0 : index
    %5 = vector.load %arg3[%c0_4, %c0_5] : memref<128x128xbf16, #tpu.memory_space<vmem>>, vector<128x128xbf16>
    %cst = arith.constant dense<0.000000e+00> : vector<128x128xf32>
    %6 = tpu.matmul %4, %5, %cst {dimension_numbers = #tpu.dot_dimension_numbers<[1], [0], [0], [1], [0, 0, 1, 1], [], []>} : vector<128x128xbf16>, vector<128x128xbf16>, vector<128x128xf32> -> vector<128x128xf32>
    %7 = arith.addf %3, %6 : vector<128x128xf32>
    %c0_6 = arith.constant 0 : index
    %c0_7 = arith.constant 0 : index
    %8 = vector.load %arg7[%c0_6, %c0_7] : memref<128x128xf32, #tpu.memory_space<vmem>>, vector<128x128xf32>
    tpu.vector_store %arg7[%c0_6, %c0_7], %7 {strides = array<i32>} : memref<128x128xf32, #tpu.memory_space<vmem>>, vector<128x128xf32>,
    %c0_i32_8 = arith.constant 0 : i32
    %9 = arith.cmpi eq, %arg1, %c0_i32_8 : i32
    %10 = arith.extui %9 : i1 to i32
    %c0_i32_9 = arith.constant 0 : i32
    %11 = arith.cmpi ne, %10, %c0_i32_9 : i32
    scf.if %11 {
      %c0_10 = arith.constant 0 : index
      %c0_11 = arith.constant 0 : index
      %12 = vector.load %arg7[%c0_10, %c0_11] : memref<128x128xf32, #tpu.memory_space<vmem>>, vector<128x128xf32>
      %c0_12 = arith.constant 0 : index
      %c0_13 = arith.constant 0 : index
      %13 = vector.load %arg4[%c0_12, %c0_13] : memref<1x128xf32, #tpu.memory_space<vmem>>, vector<1x128xf32>
      %14 = vector.broadcast %13 : vector<1x128xf32> to vector<128x128xf32>
      %15 = arith.mulf %12, %14 : vector<128x128xf32>
      %c0_14 = arith.constant 0 : index
      %c0_15 = arith.constant 0 : index
      %16 = vector.load %arg5[%c0_14, %c0_15] : memref<1x128xf32, #tpu.memory_space<vmem>>, vector<1x128xf32>
      %17 = vector.broadcast %16 : vector<1x128xf32> to vector<128x128xf32>
      %18 = arith.addf %15, %17 : vector<128x128xf32>
      %cst_16 = arith.constant 0.000000e+00 : f32
      %19 = vector.broadcast %cst_16 : f32 to vector<128x128xf32>
      %20 = arith.cmpf oge, %18, %19 : vector<128x128xf32>
      %cst_17 = arith.constant 2.000000e-01 : f32
      %21 = vector.broadcast %cst_17 : f32 to vector<128x128xf32>
      %22 = arith.mulf %21, %18 : vector<128x128xf32>
      %23 = arith.select %20, %18, %22 : vector<128x128xi1>, vector<128x128xf32>
      %c0_18 = arith.constant 0 : index
      %c0_19 = arith.constant 0 : index
      %24 = vector.load %arg6[%c0_18, %c0_19] : memref<128x128xf32, #tpu.memory_space<vmem>>, vector<128x128xf32>
      tpu.vector_store %arg6[%c0_18, %c0_19], %23 {strides = array<i32>} : memref<128x128xf32, #tpu.memory_space<vmem>>, vector<128x128xf32>,
    } else {
    }
    return
  }
  func.func @transform_0(%arg0: i32, %arg1: i32) -> (i32, i32) {
    %c0_i32 = arith.constant 0 : i32
    return %arg0, %arg1 : i32, i32
  }
  func.func @transform_1(%arg0: i32, %arg1: i32) -> (i32, i32) {
    %c0_i32 = arith.constant 0 : i32
    %c0_i32_0 = arith.constant 0 : i32
    return %arg1, %c0_i32 : i32, i32
  }
  func.func @transform_2(%arg0: i32, %arg1: i32) -> (i32, i32) {
    %c0_i32 = arith.constant 0 : i32
    %c0_i32_0 = arith.constant 0 : i32
    %c0_i32_1 = arith.constant 0 : i32
    return %c0_i32, %c0_i32_0 : i32, i32
  }
  func.func @transform_3(%arg0: i32, %arg1: i32) -> (i32, i32) {
    %c0_i32 = arith.constant 0 : i32
    %c0_i32_0 = arith.constant 0 : i32
    %c0_i32_1 = arith.constant 0 : i32
    return %c0_i32, %c0_i32_0 : i32, i32
  }
  func.func @transform_4(%arg0: i32, %arg1: i32) -> (i32, i32) {
    %c0_i32 = arith.constant 0 : i32
    %c0_i32_0 = arith.constant 0 : i32
    return %arg0, %c0_i32 : i32, i32
  }
}

</mosaic_0001>

<llo_original>
// kernel: tpu_custom_call.1
$region0: #{tpu_custom_call.1}
  #allocation0 [shape = 'u32[]', space=smem, size = 0x4, offset = 0x4, fixed_abs, tag = 'smem constant byte address 0x4 - core index']
  #allocation1 [shape = 'u32[144,128]{1,0:T(1,128)}', space=vmem, size = 0x12000, scoped, tag = 'internal scratch']
  #allocation2 [shape = 'f32[128,128]{1,0:T(8,128)}', space=vmem, size = 0x10000, scoped, tag = 'scratch operand']
  %s0 = inlined_call_operand.hbm [shape: bf16[128,128], index: 0, kind: input, shape index: {}]
  %s1 = inlined_call_operand.hbm [shape: bf16[128,128], index: 1, kind: input, shape index: {}]
  %s2 = inlined_call_operand.vmem [shape: f32[1,128], index: 2, kind: input, shape index: {}]
  %s3 = inlined_call_operand.vmem [shape: f32[1,128], index: 3, kind: input, shape index: {}]
  %s4 = inlined_call_operand.hbm [shape: f32[128,128], index: 4, kind: output, shape index: {}]
  %s5 = sld [smem:[#allocation0]]
  $region42: #{tpu_custom_call.1} parent=0
    _
  %s7 = ssub.s32 1, %s5
  %s8 = scalar_select 0, %s7, %s5
  $region1: #{tpu_custom_call.1} parent=0
    #allocation3 [shape = 'u8[32768]{0}', space=vmem, size = 0x8000, scoped, tag = 'input window, operand 0, single buffered']
    #allocation4 [shape = 's32[1]{0}', space=sflag, size = 0x4, scoped, tag = 'scoped memory for tpu_custom_call.1']
    #allocation5 [shape = 's32[1]{0}', space=sflag, size = 0x4, scoped, tag = 'scoped memory for tpu_custom_call.1']
    #allocation6 [shape = 'u8[32768]{0}', space=vmem, size = 0x8000, scoped, tag = 'input window, operand 1, single buffered']
    #allocation7 [shape = 's32[1]{0}', space=sflag, size = 0x4, scoped, tag = 'scoped memory for tpu_custom_call.1']
    #allocation8 [shape = 'u8[65536]{0}', space=vmem, size = 0x10000, scoped, tag = 'output window, operand 0, single buffered']
    %9 = vsyncpa [#allocation4], 0
    %10 = vsyncpa [#allocation7], 0
    %11 = vsyncpa [#allocation5], 0
    // Predicated region
    $region2: #{tpu_custom_call.1} parent=1 // pred_check
      _
    $region3: #{tpu_custom_call.1} parent=1 // pred_check_branch
      %13 = sbr.rel (0) target = $region5
    $region4: #{tpu_custom_call.1} parent=1 // pred_region
      %s15 = ssub.s32 1024, 1024
      %16 = vsyncadd [#allocation4], %s15
      %s17 = sshll.u32 [#allocation3], 4
      %s18 = int_to_ptr.vmem [resolvable:$true] %s17
      %23 = dma.hbm_to_vmem [thread:$0]  %s0, 1024, %s18, [#allocation4], 64, 64, 4
    $region5: #{tpu_custom_call.1} parent=1 // pred_fallthru
      _
    // Predicated region
    $region6: #{tpu_custom_call.1} parent=1 // pred_check
      _
    $region7: #{tpu_custom_call.1} parent=1 // pred_check_branch
      %25 = sbr.rel (0) target = $region9
    $region8: #{tpu_custom_call.1} parent=1 // pred_region
      %s27 = ssub.s32 1024, 1024
      %28 = vsyncadd [#allocation7], %s27
      %s29 = sshll.u32 [#allocation6], 4
      %s30 = int_to_ptr.vmem [resolvable:$true] %s29
      %35 = dma.hbm_to_vmem [thread:$0]  %s1, 1024, %s30, [#allocation7], 64, 64, 4
    $region9: #{tpu_custom_call.1} parent=1 // pred_fallthru
      _
    // Predicated region
    $region10: #{tpu_custom_call.1} parent=1 // pred_check
      _
    $region11: #{tpu_custom_call.1} parent=1 // pred_check_branch
      %37 = sbr.rel (0) target = $region13
    $region12: #{tpu_custom_call.1} parent=1 // pred_region
      _
    $region13: #{tpu_custom_call.1} parent=1 // pred_fallthru
      _
    // Predicated region
    $region14: #{tpu_custom_call.1} parent=1 // pred_check
      _
    $region15: #{tpu_custom_call.1} parent=1 // pred_check_branch
      %39 = sbr.rel (0) target = $region17
    $region16: #{tpu_custom_call.1} parent=1 // pred_region
      _
    $region17: #{tpu_custom_call.1} parent=1 // pred_fallthru
      _
    // Predicated region
    $region18: #{tpu_custom_call.1} parent=1 // pred_check
      _
    $region19: #{tpu_custom_call.1} parent=1 // pred_check_branch
      %41 = sbr.rel (0) target = $region21
    $region20: #{tpu_custom_call.1} parent=1 // pred_region
      %42 = dma.done [#allocation4], 1024
    $region21: #{tpu_custom_call.1} parent=1 // pred_fallthru
      _
    // Predicated region
    $region22: #{tpu_custom_call.1} parent=1 // pred_check
      _
    $region23: #{tpu_custom_call.1} parent=1 // pred_check_branch
      %44 = sbr.rel (0) target = $region25
    $region24: #{tpu_custom_call.1} parent=1 // pred_region
      %45 = dma.done [#allocation7], 1024
    $region25: #{tpu_custom_call.1} parent=1 // pred_fallthru
      _
    %p47 = scmp.eq.s32.totalorder 0, 0
    // Predicated region
    $region26: #{tpu_custom_call.1} parent=1 // pred_check
      %p48 = pneg %p47
    $region27: #{tpu_custom_call.1} parent=1 // pred_check_branch
      %50 = sbr.rel (%p48) target = $region29
    $region28: #{tpu_custom_call.1} parent=1 // pred_region
      %51 = vst [vmem:[#allocation2] sm:$0xff] 0.0
      %52 = vst [vmem:[#allocation2 + $0x8] sm:$0xff] 0.0
      %53 = vst [vmem:[#allocation2 + $0x10] sm:$0xff] 0.0
      %54 = vst [vmem:[#allocation2 + $0x18] sm:$0xff] 0.0
      %55 = vst [vmem:[#allocation2 + $0x20] sm:$0xff] 0.0
      %56 = vst [vmem:[#allocation2 + $0x28] sm:$0xff] 0.0
      %57 = vst [vmem:[#allocation2 + $0x30] sm:$0xff] 0.0
      %58 = vst [vmem:[#allocation2 + $0x38] sm:$0xff] 0.0
      %59 = vst [vmem:[#allocation2 + $0x40] sm:$0xff] 0.0
      %60 = vst [vmem:[#allocation2 + $0x48] sm:$0xff] 0.0
      %61 = vst [vmem:[#allocation2 + $0x50] sm:$0xff] 0.0
      %62 = vst [vmem:[#allocation2 + $0x58] sm:$0xff] 0.0
      %63 = vst [vmem:[#allocation2 + $0x60] sm:$0xff] 0.0
      %64 = vst [vmem:[#allocation2 + $0x68] sm:$0xff] 0.0
      %65 = vst [vmem:[#allocation2 + $0x70] sm:$0xff] 0.0
      %66 = vst [vmem:[#allocation2 + $0x78] sm:$0xff] 0.0
    $region29: #{tpu_custom_call.1} parent=1 // pred_fallthru
      _
    %v67 = vld [vmem:[#allocation2] sm:$0xff]
    %v68 = vld [vmem:[#allocation2 + $0x8] sm:$0xff]
    %v69 = vld [vmem:[#allocation2 + $0x10] sm:$0xff]
    %v70 = vld [vmem:[#allocation2 + $0x18] sm:$0xff]
    %v71 = vld [vmem:[#allocation2 + $0x20] sm:$0xff]
    %v72 = vld [vmem:[#allocation2 + $0x28] sm:$0xff]
    %v73 = vld [vmem:[#allocation2 + $0x30] sm:$0xff]
    %v74 = vld [vmem:[#allocation2 + $0x38] sm:$0xff]
    %v75 = vld [vmem:[#allocation2 + $0x40] sm:$0xff]
    %v76 = vld [vmem:[#allocation2 + $0x48] sm:$0xff]
    %v77 = vld [vmem:[#allocation2 + $0x50] sm:$0xff]
    %v78 = vld [vmem:[#allocation2 + $0x58] sm:$0xff]
    %v79 = vld [vmem:[#allocation2 + $0x60] sm:$0xff]
    %v80 = vld [vmem:[#allocation2 + $0x68] sm:$0xff]
    %v81 = vld [vmem:[#allocation2 + $0x70] sm:$0xff]
    %v82 = vld [vmem:[#allocation2 + $0x78] sm:$0xff]
    %v83 = vld [vmem:[#allocation3] sm:$0xf]
    %v84 = vld [vmem:[#allocation3 + $0x4] sm:$0xf]
    %v85 = vld [vmem:[#allocation3 + $0x8] sm:$0xf]
    %v86 = vld [vmem:[#allocation3 + $0xc] sm:$0xf]
    %v87 = vld [vmem:[#allocation3 + $0x10] sm:$0xf]
    %v88 = vld [vmem:[#allocation3 + $0x14] sm:$0xf]
    %v89 = vld [vmem:[#allocation3 + $0x18] sm:$0xf]
    %v90 = vld [vmem:[#allocation3 + $0x1c] sm:$0xf]
    %v91 = vld [vmem:[#allocation3 + $0x20] sm:$0xf]
    %v92 = vld [vmem:[#allocation3 + $0x24] sm:$0xf]
    %v93 = vld [vmem:[#allocation3 + $0x28] sm:$0xf]
    %v94 = vld [vmem:[#allocation3 + $0x2c] sm:$0xf]
    %v95 = vld [vmem:[#allocation3 + $0x30] sm:$0xf]
    %v96 = vld [vmem:[#allocation3 + $0x34] sm:$0xf]
    %v97 = vld [vmem:[#allocation3 + $0x38] sm:$0xf]
    %v98 = vld [vmem:[#allocation3 + $0x3c] sm:$0xf]
    %v99 = vld [vmem:[#allocation6] sm:$0xf]
    %v100 = vld [vmem:[#allocation6 + $0x4] sm:$0xf]
    %v101 = vld [vmem:[#allocation6 + $0x8] sm:$0xf]
    %v102 = vld [vmem:[#allocation6 + $0xc] sm:$0xf]
    %v103 = vld [vmem:[#allocation6 + $0x10] sm:$0xf]
    %v104 = vld [vmem:[#allocation6 + $0x14] sm:$0xf]
    %v105 = vld [vmem:[#allocation6 + $0x18] sm:$0xf]
    %v106 = vld [vmem:[#allocation6 + $0x1c] sm:$0xf]
    %v107 = vld [vmem:[#allocation6 + $0x20] sm:$0xf]
    %v108 = vld [vmem:[#allocation6 + $0x24] sm:$0xf]
    %v109 = vld [vmem:[#allocation6 + $0x28] sm:$0xf]
    %v110 = vld [vmem:[#allocation6 + $0x2c] sm:$0xf]
    %v111 = vld [vmem:[#allocation6 + $0x30] sm:$0xf]
    %v112 = vld [vmem:[#allocation6 + $0x34] sm:$0xf]
    %v113 = vld [vmem:[#allocation6 + $0x38] sm:$0xf]
    %v114 = vld [vmem:[#allocation6 + $0x3c] sm:$0xf]
    %v131 = vunpack.c.l.b16 %v83
    %v132 = vunpack.c.l.b16 %v84
    %v133 = vunpack.c.l.b16 %v85
    %v134 = vunpack.c.l.b16 %v86
    %v135 = vunpack.c.l.b16 %v87
    %v136 = vunpack.c.l.b16 %v88
    %v137 = vunpack.c.l.b16 %v89
    %v138 = vunpack.c.l.b16 %v90
    %v139 = vunpack.c.l.b16 %v91
    %v140 = vunpack.c.l.b16 %v92
    %v141 = vunpack.c.l.b16 %v93
    %v142 = vunpack.c.l.b16 %v94
    %v143 = vunpack.c.l.b16 %v95
    %v144 = vunpack.c.l.b16 %v96
    %v145 = vunpack.c.l.b16 %v97
    %v146 = vunpack.c.l.b16 %v98
    %v147 = vpack.c.b16 %v132, %v131
    %v148 = vpack.c.b16 %v134, %v133
    %v149 = vpack.c.b16 %v136, %v135
    %v150 = vpack.c.b16 %v138, %v137
    %v151 = vpack.c.b16 %v140, %v139
    %v152 = vpack.c.b16 %v142, %v141
    %v153 = vpack.c.b16 %v144, %v143
    %v154 = vpack.c.b16 %v146, %v145
    %v179 = vunpack.c.l.b16 %v99
    %v180 = vunpack.c.l.b16 %v100
    %v181 = vunpack.c.l.b16 %v101
    %v182 = vunpack.c.l.b16 %v102
    %v183 = vunpack.c.l.b16 %v103
    %v184 = vunpack.c.l.b16 %v104
    %v185 = vunpack.c.l.b16 %v105
    %v186 = vunpack.c.l.b16 %v106
    %v187 = vunpack.c.l.b16 %v107
    %v188 = vunpack.c.l.b16 %v108
    %v189 = vunpack.c.l.b16 %v109
    %v190 = vunpack.c.l.b16 %v110
    %v191 = vunpack.c.l.b16 %v111
    %v192 = vunpack.c.l.b16 %v112
    %v193 = vunpack.c.l.b16 %v113
    %v194 = vunpack.c.l.b16 %v114
    %v195 = vpack.c.b16 %v180, %v179
    %v196 = vpack.c.b16 %v182, %v181
    %v197 = vpack.c.b16 %v184, %v183
    %v198 = vpack.c.b16 %v186, %v185
    %v199 = vpack.c.b16 %v188, %v187
    %v200 = vpack.c.b16 %v190, %v189
    %v201 = vpack.c.b16 %v192, %v191
    %v202 = vpack.c.b16 %v194, %v193
    %211 = vmatprep.subr.bf16.mxu0 0
    %212 = vmatpush1.bf16.msra.mxu0 %v202
    %213 = vmatprep.subr.bf16.mxu0 0
    %214 = vmatpush1.bf16.msra.mxu0 %v201
    %215 = vmatprep.subr.bf16.mxu0 0
    %216 = vmatpush1.bf16.msra.mxu0 %v200
    %217 = vmatprep.subr.bf16.mxu0 0
    %218 = vmatpush1.bf16.msra.mxu0 %v199
    %219 = vmatprep.subr.bf16.mxu0 0
    %220 = vmatpush1.bf16.msra.mxu0 %v198
    %221 = vmatprep.subr.bf16.mxu0 0
    %222 = vmatpush1.bf16.msra.mxu0 %v197
    %223 = vmatprep.subr.bf16.mxu0 0
    %224 = vmatpush1.bf16.msra.mxu0 %v196
    %225 = vmatprep.subr.bf16.mxu0 0
    %226 = vmatpush1.bf16.msra.mxu0 %v195
    %227 = vmatprep.subr.bf16.mxu0 0
    %228 = vmatpush2.bf16.msra.mxu0 0
    %229 = vmatprep.subr.bf16.mxu0 0
    %230 = vmatpush2.bf16.msra.mxu0 0
    %231 = vmatprep.subr.bf16.mxu0 0
    %232 = vmatpush2.bf16.msra.mxu0 0
    %233 = vmatprep.subr.bf16.mxu0 0
    %234 = vmatpush2.bf16.msra.mxu0 0
    %235 = vmatprep.subr.bf16.mxu0 0
    %236 = vmatpush2.bf16.msra.mxu0 0
    %237 = vmatprep.subr.bf16.mxu0 0
    %238 = vmatpush2.bf16.msra.mxu0 0
    %239 = vmatprep.subr.bf16.mxu0 0
    %240 = vmatpush2.bf16.msra.mxu0 0
    %241 = vmatprep.subr.bf16.mxu0 0
    %242 = vmatpush2.bf16.msra.mxu0 0
    %243 = vmatprep.mubr.bf16.mxu0 0
    %244 = vmatmul.mubr.bf16.gmra.mxu0 %v147
    %v245 = vpop.f32.mrf.mxu0
    %v246 = vadd.f32 0.0, %v245
    %v247 = vpop.f32.mrf.mxu0
    %v248 = vpop.f32.mrf.mxu0
    %v249 = vadd.f32 0.0, %v248
    %v250 = vpop.f32.mrf.mxu0
    %251 = vmatprep.mubr.bf16.mxu0 0
    %252 = vmatmul.mubr.bf16.gmra.mxu0 %v148
    %v253 = vpop.f32.mrf.mxu0
    %v254 = vadd.f32 0.0, %v253
    %v255 = vpop.f32.mrf.mxu0
    %v256 = vpop.f32.mrf.mxu0
    %v257 = vadd.f32 0.0, %v256
    %v258 = vpop.f32.mrf.mxu0
    %259 = vmatprep.mubr.bf16.mxu0 0
    %260 = vmatmul.mubr.bf16.gmra.mxu0 %v149
    %v261 = vpop.f32.mrf.mxu0
    %v262 = vadd.f32 0.0, %v261
    %v263 = vpop.f32.mrf.mxu0
    %v264 = vpop.f32.mrf.mxu0
    %v265 = vadd.f32 0.0, %v264
    %v266 = vpop.f32.mrf.mxu0
    %267 = vmatprep.mubr.bf16.mxu0 0
    %268 = vmatmul.mubr.bf16.gmra.mxu0 %v150
    %v269 = vpop.f32.mrf.mxu0
    %v270 = vadd.f32 0.0, %v269
    %v271 = vpop.f32.mrf.mxu0
    %v272 = vpop.f32.mrf.mxu0
    %v273 = vadd.f32 0.0, %v272
    %v274 = vpop.f32.mrf.mxu0
    %275 = vmatprep.mubr.bf16.mxu0 0
    %276 = vmatmul.mubr.bf16.gmra.mxu0 %v151
    %v277 = vpop.f32.mrf.mxu0
    %v278 = vadd.f32 0.0, %v277
    %v279 = vpop.f32.mrf.mxu0
    %v280 = vpop.f32.mrf.mxu0
    %v281 = vadd.f32 0.0, %v280
    %v282 = vpop.f32.mrf.mxu0
    %283 = vmatprep.mubr.bf16.mxu0 0
    %284 = vmatmul.mubr.bf16.gmra.mxu0 %v152
    %v285 = vpop.f32.mrf.mxu0
    %v286 = vadd.f32 0.0, %v285
    %v287 = vpop.f32.mrf.mxu0
    %v288 = vpop.f32.mrf.mxu0
    %v289 = vadd.f32 0.0, %v288
    %v290 = vpop.f32.mrf.mxu0
    %291 = vmatprep.mubr.bf16.mxu0 0
    %292 = vmatmul.mubr.bf16.gmra.mxu0 %v153
    %v293 = vpop.f32.mrf.mxu0
    %v294 = vadd.f32 0.0, %v293
    %v295 = vpop.f32.mrf.mxu0
    %v296 = vpop.f32.mrf.mxu0
    %v297 = vadd.f32 0.0, %v296
    %v298 = vpop.f32.mrf.mxu0
    %299 = vmatprep.mubr.bf16.mxu0 0
    %300 = vmatmul.mubr.bf16.gmra.mxu0 %v154
    %v301 = vpop.f32.mrf.mxu0
    %v302 = vadd.f32 0.0, %v301
    %v303 = vpop.f32.mrf.mxu0
    %v304 = vpop.f32.mrf.mxu0
    %v305 = vadd.f32 0.0, %v304
    %v306 = vpop.f32.mrf.mxu0
    %307 = vdwg.mxu0
    %v308 = vadd.f32 %v67, %v246
    %v309 = vadd.f32 %v68, %v249
    %v310 = vadd.f32 %v69, %v254
    %v311 = vadd.f32 %v70, %v257
    %v312 = vadd.f32 %v71, %v262
    %v313 = vadd.f32 %v72, %v265
    %v314 = vadd.f32 %v73, %v270
    %v315 = vadd.f32 %v74, %v273
    %v316 = vadd.f32 %v75, %v278
    %v317 = vadd.f32 %v76, %v281
    %v318 = vadd.f32 %v77, %v286
    %v319 = vadd.f32 %v78, %v289
    %v320 = vadd.f32 %v79, %v294
    %v321 = vadd.f32 %v80, %v297
    %v322 = vadd.f32 %v81, %v302
    %v323 = vadd.f32 %v82, %v305
    %324 = vst [vmem:[#allocation2] sm:$0xff] %v308
    %325 = vst [vmem:[#allocation2 + $0x8] sm:$0xff] %v309
    %326 = vst [vmem:[#allocation2 + $0x10] sm:$0xff] %v310
    %327 = vst [vmem:[#allocation2 + $0x18] sm:$0xff] %v311
    %328 = vst [vmem:[#allocation2 + $0x20] sm:$0xff] %v312
    %329 = vst [vmem:[#allocation2 + $0x28] sm:$0xff] %v313
    %330 = vst [vmem:[#allocation2 + $0x30] sm:$0xff] %v314
    %331 = vst [vmem:[#allocation2 + $0x38] sm:$0xff] %v315
    %332 = vst [vmem:[#allocation2 + $0x40] sm:$0xff] %v316
    %333 = vst [vmem:[#allocation2 + $0x48] sm:$0xff] %v317
    %334 = vst [vmem:[#allocation2 + $0x50] sm:$0xff] %v318
    %335 = vst [vmem:[#allocation2 + $0x58] sm:$0xff] %v319
    %336 = vst [vmem:[#allocation2 + $0x60] sm:$0xff] %v320
    %337 = vst [vmem:[#allocation2 + $0x68] sm:$0xff] %v321
    %338 = vst [vmem:[#allocation2 + $0x70] sm:$0xff] %v322
    %339 = vst [vmem:[#allocation2 + $0x78] sm:$0xff] %v323
    // Predicated region
    $region30: #{tpu_custom_call.1} parent=1 // pred_check
      %p340 = pneg %p47
    $region31: #{tpu_custom_call.1} parent=1 // pred_check_branch
      %342 = sbr.rel (%p340) target = $region33
    $region32: #{tpu_custom_call.1} parent=1 // pred_region
      %v343 = vld [vmem:[#allocation2] sm:$0xff]
      %v344 = vld [vmem:[#allocation2 + $0x8] sm:$0xff]
      %v345 = vld [vmem:[#allocation2 + $0x10] sm:$0xff]
      %v346 = vld [vmem:[#allocation2 + $0x18] sm:$0xff]
      %v347 = vld [vmem:[#allocation2 + $0x20] sm:$0xff]
      %v348 = vld [vmem:[#allocation2 + $0x28] sm:$0xff]
      %v349 = vld [vmem:[#allocation2 + $0x30] sm:$0xff]
      %v350 = vld [vmem:[#allocation2 + $0x38] sm:$0xff]
      %v351 = vld [vmem:[#allocation2 + $0x40] sm:$0xff]
      %v352 = vld [vmem:[#allocation2 + $0x48] sm:$0xff]
      %v353 = vld [vmem:[#allocation2 + $0x50] sm:$0xff]
      %v354 = vld [vmem:[#allocation2 + $0x58] sm:$0xff]
      %v355 = vld [vmem:[#allocation2 + $0x60] sm:$0xff]
      %v356 = vld [vmem:[#allocation2 + $0x68] sm:$0xff]
      %v357 = vld [vmem:[#allocation2 + $0x70] sm:$0xff]
      %v358 = vld [vmem:[#allocation2 + $0x78] sm:$0xff]
      %v359 = vld [vmem:[%s2] sm:$0x1]
      %v361 = vlaneseq
      %v362 = vshrl.u32 %v361, 7
      %v363 = vsub.s32 0, %v362
      %v364 = vrot.slane %v359, %v363
      %v366 = vmul.f32 %v343, %v364
      %v367 = vmul.f32 %v344, %v364
      %v368 = vmul.f32 %v345, %v364
      %v369 = vmul.f32 %v346, %v364
      %v370 = vmul.f32 %v347, %v364
      %v371 = vmul.f32 %v348, %v364
      %v372 = vmul.f32 %v349, %v364
      %v373 = vmul.f32 %v350, %v364
      %v374 = vmul.f32 %v351, %v364
      %v375 = vmul.f32 %v352, %v364
      %v376 = vmul.f32 %v353, %v364
      %v377 = vmul.f32 %v354, %v364
      %v378 = vmul.f32 %v355, %v364
      %v379 = vmul.f32 %v356, %v364
      %v380 = vmul.f32 %v357, %v364
      %v381 = vmul.f32 %v358, %v364
      %v382 = vld [vmem:[%s3] sm:$0x1]
      %v384 = vlaneseq
      %v385 = vshrl.u32 %v384, 7
      %v386 = vsub.s32 0, %v385
      %v387 = vrot.slane %v382, %v386
      %v389 = vadd.f32 %v366, %v387
      %v390 = vadd.f32 %v367, %v387
      %v391 = vadd.f32 %v368, %v387
      %v392 = vadd.f32 %v369, %v387
      %v393 = vadd.f32 %v370, %v387
      %v394 = vadd.f32 %v371, %v387
      %v395 = vadd.f32 %v372, %v387
      %v396 = vadd.f32 %v373, %v387
      %v397 = vadd.f32 %v374, %v387
      %v398 = vadd.f32 %v375, %v387
      %v399 = vadd.f32 %v376, %v387
      %v400 = vadd.f32 %v377, %v387
      %v401 = vadd.f32 %v378, %v387
      %v402 = vadd.f32 %v379, %v387
      %v403 = vadd.f32 %v380, %v387
      %v404 = vadd.f32 %v381, %v387
      %vm405 = vcmp.ge.f32.partialorder %v389, 0.0
      %vm406 = vcmp.ge.f32.partialorder %v390, 0.0
      %vm407 = vcmp.ge.f32.partialorder %v391, 0.0
      %vm408 = vcmp.ge.f32.partialorder %v392, 0.0
      %vm409 = vcmp.ge.f32.partialorder %v393, 0.0
      %vm410 = vcmp.ge.f32.partialorder %v394, 0.0
      %vm411 = vcmp.ge.f32.partialorder %v395, 0.0
      %vm412 = vcmp.ge.f32.partialorder %v396, 0.0
      %vm413 = vcmp.ge.f32.partialorder %v397, 0.0
      %vm414 = vcmp.ge.f32.partialorder %v398, 0.0
      %vm415 = vcmp.ge.f32.partialorder %v399, 0.0
      %vm416 = vcmp.ge.f32.partialorder %v400, 0.0
      %vm417 = vcmp.ge.f32.partialorder %v401, 0.0
      %vm418 = vcmp.ge.f32.partialorder %v402, 0.0
      %vm419 = vcmp.ge.f32.partialorder %v403, 0.0
      %vm420 = vcmp.ge.f32.partialorder %v404, 0.0
      %v421 = vmul.f32 %v389, 0.2
      %v422 = vmul.f32 %v390, 0.2
      %v423 = vmul.f32 %v391, 0.2
      %v424 = vmul.f32 %v392, 0.2
      %v425 = vmul.f32 %v393, 0.2
      %v426 = vmul.f32 %v394, 0.2
      %v427 = vmul.f32 %v395, 0.2
      %v428 = vmul.f32 %v396, 0.2
      %v429 = vmul.f32 %v397, 0.2
      %v430 = vmul.f32 %v398, 0.2
      %v431 = vmul.f32 %v399, 0.2
      %v432 = vmul.f32 %v400, 0.2
      %v433 = vmul.f32 %v401, 0.2
      %v434 = vmul.f32 %v402, 0.2
      %v435 = vmul.f32 %v403, 0.2
      %v436 = vmul.f32 %v404, 0.2
      %v437 = vsel %vm405, %v389, %v421
      %v438 = vsel %vm406, %v390, %v422
      %v439 = vsel %vm407, %v391, %v423
      %v440 = vsel %vm408, %v392, %v424
      %v441 = vsel %vm409, %v393, %v425
      %v442 = vsel %vm410, %v394, %v426
      %v443 = vsel %vm411, %v395, %v427
      %v444 = vsel %vm412, %v396, %v428
      %v445 = vsel %vm413, %v397, %v429
      %v446 = vsel %vm414, %v398, %v430
      %v447 = vsel %vm415, %v399, %v431
      %v448 = vsel %vm416, %v400, %v432
      %v449 = vsel %vm417, %v401, %v433
      %v450 = vsel %vm418, %v402, %v434
      %v451 = vsel %vm419, %v403, %v435
      %v452 = vsel %vm420, %v404, %v436
      %453 = vst [vmem:[#allocation8] sm:$0xff] %v437
      %454 = vst [vmem:[#allocation8 + $0x8] sm:$0xff] %v438
      %455 = vst [vmem:[#allocation8 + $0x10] sm:$0xff] %v439
      %456 = vst [vmem:[#allocation8 + $0x18] sm:$0xff] %v440
      %457 = vst [vmem:[#allocation8 + $0x20] sm:$0xff] %v441
      %458 = vst [vmem:[#allocation8 + $0x28] sm:$0xff] %v442
      %459 = vst [vmem:[#allocation8 + $0x30] sm:$0xff] %v443
      %460 = vst [vmem:[#allocation8 + $0x38] sm:$0xff] %v444
      %461 = vst [vmem:[#allocation8 + $0x40] sm:$0xff] %v445
      %462 = vst [vmem:[#allocation8 + $0x48] sm:$0xff] %v446
      %463 = vst [vmem:[#allocation8 + $0x50] sm:$0xff] %v447
      %464 = vst [vmem:[#allocation8 + $0x58] sm:$0xff] %v448
      %465 = vst [vmem:[#allocation8 + $0x60] sm:$0xff] %v449
      %466 = vst [vmem:[#allocation8 + $0x68] sm:$0xff] %v450
      %467 = vst [vmem:[#allocation8 + $0x70] sm:$0xff] %v451
      %468 = vst [vmem:[#allocation8 + $0x78] sm:$0xff] %v452
    $region33: #{tpu_custom_call.1} parent=1 // pred_fallthru
      _
    // Predicated region
    $region34: #{tpu_custom_call.1} parent=1 // pred_check
      _
    $region35: #{tpu_custom_call.1} parent=1 // pred_check_branch
      %470 = sbr.rel (0) target = $region37
    $region36: #{tpu_custom_call.1} parent=1 // pred_region
      %s472 = ssub.s32 2048, 2048
      %473 = vsyncadd [#allocation5], %s472
      %s474 = sshll.u32 [#allocation8], 4
      %s475 = int_to_ptr.vmem [resolvable:$true] %s474
      %480 = dma.vmem_to_hbm [thread:$0]  %s475, 2048, %s4, [#allocation5], 128, 128, 8
    $region37: #{tpu_custom_call.1} parent=1 // pred_fallthru
      _
    // Predicated region
    $region38: #{tpu_custom_call.1} parent=1 // pred_check
      _
    $region39: #{tpu_custom_call.1} parent=1 // pred_check_branch
      %482 = sbr.rel (0) target = $region41
    $region40: #{tpu_custom_call.1} parent=1 // pred_region
      %483 = dma.done [#allocation5], 2048
    $region41: #{tpu_custom_call.1} parent=1 // pred_fallthru
      _
    %484 = vsyncpa [#allocation4], 1
    %485 = vsyncpa [#allocation7], 1
    %486 = vsyncpa [#allocation5], 1

</llo_original>
